<compile_context>
chip_gen: v5e
topology: v5e:2x2
jax: 0.10.0
libtpu: 0.0.40
codegen_flags: <defaults>
</compile_context>

<pallas_src>
import math
import functools

import jax
import jax.numpy as jnp
from jax.experimental import pallas as pl
from jax.experimental.pallas import tpu as pltpu


_VMEM_LIMIT = 48 << 20   # explicit scoped-VMEM budget (> v5e 16 MiB default,
                         # < v7x 64 MiB physical); actual per-step use ~<16 MiB.


# ----------------------------------------------------------------------------
# helpers
# ----------------------------------------------------------------------------
def _round_up(x, m):
    return ((x + m - 1) // m) * m


def _pick_divisor_tile(dim, pref):
    """Largest power-of-two-ish tile <= pref dividing dim; else full dim."""
    if dim <= pref:
        return dim
    t = pref
    while t >= 8:
        if dim % t == 0:
            return t
        t //= 2
    return dim


def _row_tile_and_pad(x, pref):
    """Pick a row tile (cap pref) and zero-pad rows so the tile divides M."""
    M = x.shape[0]
    tm = min(pref, _round_up(M, 8))
    Mp = _round_up(M, tm)
    if Mp != M:
        x = jnp.pad(x, ((0, Mp - M), (0, 0)))
    return x, tm, M, Mp


# ----------------------------------------------------------------------------
# shared tiled GEMM kernel body:
#   acc += x @ w;  at k==last: y = act(acc + b) [+ residual] [-> layer-norm]
# ----------------------------------------------------------------------------
def _gemm_kernel(act, use_res, use_ln, eps, k_axis, *refs):
    x_ref, w_ref, b_ref = refs[0], refs[1], refs[2]
    pos = 3
    res_ref = g_ref = beta_ref = None
    if use_res:
        res_ref = refs[pos]
        pos += 1
    if use_ln:
        g_ref, beta_ref = refs[pos], refs[pos + 1]
        pos += 2
    o_ref, acc_ref = refs[pos], refs[pos + 1]

    k = pl.program_id(k_axis)

    @pl.when(k == 0)
    def _init():
        acc_ref[...] = jnp.zeros_like(acc_ref)

    w = w_ref[0] if len(w_ref.shape) == 3 else w_ref[...]
    acc_ref[...] += jnp.dot(x_ref[...], w, preferred_element_type=jnp.float32)

    @pl.when(k == pl.num_programs(k_axis) - 1)
    def _finalize():
        y = acc_ref[...] + b_ref[...].astype(jnp.float32)
        if act == "gelu":
            # TODO(synk): PyTorch nn.GELU defaults to exact erf; tanh approx
            # used for guaranteed Mosaic lowering (tiny numeric delta).
            y = jax.nn.gelu(y, approximate=True)
        elif act == "tanh":
            y = jnp.tanh(y)
        if use_res:
            y = y + res_ref[...].astype(jnp.float32)
        if use_ln:
            mu = jnp.mean(y, axis=-1, keepdims=True)
            var = jnp.mean(jnp.square(y - mu), axis=-1, keepdims=True)
            y = (y - mu) * jax.lax.rsqrt(var + eps)
            y = y * g_ref[...].astype(jnp.float32) + beta_ref[...].astype(jnp.float32)
        o_ref[...] = y.reshape(o_ref.shape).astype(o_ref.dtype)


# ----------------------------------------------------------------------------
# fused GEMM, full-N output (needed for the layer-norm epilogue)
# ----------------------------------------------------------------------------
def fused_linear(x, w, b, act=None, residual=None, ln=None, eps=1e-12,
                 out_dtype=jnp.bfloat16, tm_pref=1024, tk_pref=512):
    M0, K = x.shape
    N = w.shape[1]
    xp, tm, M0, Mp = _row_tile_and_pad(x, tm_pref)
    tk = _pick_divisor_tile(K, tk_pref)

    in_specs = [pl.BlockSpec((tm, tk), lambda i, k: (i, k)),
                pl.BlockSpec((tk, N), lambda i, k: (k, 0)),
                pl.BlockSpec((1, N), lambda i, k: (0, 0))]
    args = [xp, w, b]
    if residual is not None:
        r = residual
        if Mp != M0:
            r = jnp.pad(r, ((0, Mp - M0), (0, 0)))
        in_specs.append(pl.BlockSpec((tm, N), lambda i, k: (i, 0)))
        args.append(r)
    if ln is not None:
        g, beta = ln
        in_specs += [pl.BlockSpec((1, N), lambda i, k: (0, 0)),
                     pl.BlockSpec((1, N), lambda i, k: (0, 0))]
        args += [g, beta]

    kernel = functools.partial(_gemm_kernel, act,
                               residual is not None, ln is not None, eps, 1)
    out = pl.pallas_call(
        kernel,
        out_shape=jax.ShapeDtypeStruct((Mp, N), out_dtype),
        grid=(Mp // tm, K // tk),
        in_specs=in_specs,
        out_specs=pl.BlockSpec((tm, N), lambda i, k: (i, 0)),
        scratch_shapes=[pltpu.VMEM((tm, N), jnp.float32)],
        compiler_params=pltpu.CompilerParams(
            dimension_semantics=("parallel", "arbitrary"),
            vmem_limit_bytes=_VMEM_LIMIT),
    )(*args)
    return out[:M0] if Mp != M0 else out


# ----------------------------------------------------------------------------
# fused GEMM with N tiling (no LN epilogue needed) — used for FF1 (gelu)
# ----------------------------------------------------------------------------
def fused_linear_ntiled(x, w, b, act=None, out_dtype=jnp.bfloat16,
                        tm_pref=1024, tn_pref=1024, tk_pref=512):
    M0, K = x.shape
    N = w.shape[1]
    xp, tm, M0, Mp = _row_tile_and_pad(x, tm_pref)
    tk = _pick_divisor_tile(K, tk_pref)
    tn = _pick_divisor_tile(N, tn_pref)

    kernel = functools.partial(_gemm_kernel, act, False, False, 0.0, 2)
    out = pl.pallas_call(
        kernel,
        out_shape=jax.ShapeDtypeStruct((Mp, N), out_dtype),
        grid=(Mp // tm, N // tn, K // tk),
        in_specs=[pl.BlockSpec((tm, tk), lambda i, j, k: (i, k)),
                  pl.BlockSpec((tk, tn), lambda i, j, k: (k, j)),
                  pl.BlockSpec((1, tn), lambda i, j, k: (0, j))],
        out_specs=pl.BlockSpec((tm, tn), lambda i, j, k: (i, j)),
        scratch_shapes=[pltpu.VMEM((tm, tn), jnp.float32)],
        compiler_params=pltpu.CompilerParams(
            dimension_semantics=("parallel", "parallel", "arbitrary"),
            vmem_limit_bytes=_VMEM_LIMIT),
    )(xp, w, b)
    return out[:M0] if Mp != M0 else out


# ----------------------------------------------------------------------------
# fused Q/K/V projection — one GEMM, 3-slab output (3, M, H) so attention can
# read Q/K/V with full-last-dim BlockSpecs (no transposes).
# wqkv is pre-packed as (3, K, H); bqkv as (3, H).
# ----------------------------------------------------------------------------
def qkv_projection(x, wqkv, bqkv, out_dtype=jnp.bfloat16,
                   tm_pref=1024, tk_pref=512):
    M0, K = x.shape
    H = wqkv.shape[2]
    xp, tm, M0, Mp = _row_tile_and_pad(x, tm_pref)
    tk = _pick_divisor_tile(K, tk_pref)

    kernel = functools.partial(_gemm_kernel, None, False, False, 0.0, 2)
    out = pl.pallas_call(
        kernel,
        out_shape=jax.ShapeDtypeStruct((3, Mp, H), out_dtype),
        grid=(Mp // tm, 3, K // tk),
        in_specs=[pl.BlockSpec((tm, tk), lambda i, j, k: (i, k)),
                  pl.BlockSpec((1, tk, H), lambda i, j, k: (j, k, 0)),
                  pl.BlockSpec((1, H), lambda i, j, k: (j, 0))],
        out_specs=pl.BlockSpec((1, tm, H), lambda i, j, k: (j, i, 0)),
        scratch_shapes=[pltpu.VMEM((tm, H), jnp.float32)],
        compiler_params=pltpu.CompilerParams(
            dimension_semantics=("parallel", "parallel", "arbitrary"),
            vmem_limit_bytes=_VMEM_LIMIT),
    )(xp, wqkv, bqkv)
    return out[:, :M0] if Mp != M0 else out


# ----------------------------------------------------------------------------
# row-tiled layer-norm (embedding output)
# ----------------------------------------------------------------------------
def _ln_kernel(eps, x_ref, g_ref, b_ref, o_ref):
    x = x_ref[...].astype(jnp.float32)
    mu = jnp.mean(x, axis=-1, keepdims=True)
    var = jnp.mean(jnp.square(x - mu), axis=-1, keepdims=True)
    y = (x - mu) * jax.lax.rsqrt(var + eps) * g_ref[...] + b_ref[...]
    o_ref[...] = y.astype(o_ref.dtype)


def layer_norm(x, g, b, eps=1e-12, out_dtype=jnp.bfloat16, tm_pref=1024):
    M0, H = x.shape
    xp, tm, M0, Mp = _row_tile_and_pad(x, tm_pref)
    out = pl.pallas_call(
        functools.partial(_ln_kernel, eps),
        out_shape=jax.ShapeDtypeStruct((Mp, H), out_dtype),
        grid=(Mp // tm,),
        in_specs=[pl.BlockSpec((tm, H), lambda i: (i, 0)),
                  pl.BlockSpec((1, H), lambda i: (0, 0)),
                  pl.BlockSpec((1, H), lambda i: (0, 0))],
        out_specs=pl.BlockSpec((tm, H), lambda i: (i, 0)),
        compiler_params=pltpu.CompilerParams(
            dimension_semantics=("parallel",),
            vmem_limit_bytes=_VMEM_LIMIT),
    )(xp, g, b)
    return out[:M0] if Mp != M0 else out


# ----------------------------------------------------------------------------
# masked attention: full-S K/V resident, all heads per step, lane-dense I/O.
#   qkv: (3, B, S, H) bf16;  valid_length: (B,) int32 scalar-prefetched.
#   grid = (B, S//tq);  exact softmax (no online rescale needed).
# ----------------------------------------------------------------------------
def _attn_kernel(num_heads, dh, scale, vl_ref, q_ref, k_ref, v_ref, o_ref):
    b = pl.program_id(0)
    vl = vl_ref[b]

    q = q_ref[0, 0]          # (tq, H) bf16
    k = k_ref[0, 0]          # (S,  H) bf16
    v = v_ref[0, 0]          # (S,  H) bf16
    S = k.shape[0]
    kmask = jax.lax.broadcasted_iota(jnp.int32, (1, S), 1) < vl   # (1, S)

    outs = []
    for h in range(num_heads):     # static unroll; slices are VMEM-local
        lo = h * dh
        qh = q[:, lo:lo + dh]
        kh = k[:, lo:lo + dh]
        vh = v[:, lo:lo + dh]
        s = jax.lax.dot_general(qh, kh, (((1,), (1,)), ((), ())),
                                preferred_element_type=jnp.float32) * scale
        s = jnp.where(kmask, s, jnp.float32(-1e9))
        m = jnp.max(s, axis=-1, keepdims=True)
        p = jnp.exp(s - m)
        denom = jnp.sum(p, axis=-1, keepdims=True)       # >= 1, never 0
        pv = jnp.dot(p.astype(vh.dtype), vh, preferred_element_type=jnp.float32)
        outs.append(pv / denom)                           # exact normalization

    o_ref[0] = jnp.concatenate(outs, axis=-1).astype(o_ref.dtype)


def masked_attention(qkv, valid_length, num_heads, tq_pref=512):
    _, B, S, H = qkv.shape
    dh = H // num_heads
    scale = 1.0 / math.sqrt(dh)
    tq = _pick_divisor_tile(S, tq_pref)
    kernel = functools.partial(_attn_kernel, num_heads, dh, scale)
    return pl.pallas_call(
        kernel,
        out_shape=jax.ShapeDtypeStruct((B, S, H), jnp.bfloat16),
        grid_spec=pltpu.PrefetchScalarGridSpec(
            num_scalar_prefetch=1,
            grid=(B, S // tq),
            in_specs=[
                pl.BlockSpec((1, 1, tq, H), lambda b, qi, vl: (0, b, qi, 0)),
                pl.BlockSpec((1, 1, S, H), lambda b, qi, vl: (1, b, 0, 0)),
                pl.BlockSpec((1, 1, S, H), lambda b, qi, vl: (2, b, 0, 0)),
            ],
            out_specs=pl.BlockSpec((1, tq, H), lambda b, qi, vl: (b, qi, 0)),
        ),
        compiler_params=pltpu.CompilerParams(
            dimension_semantics=("parallel", "parallel"),
            vmem_limit_bytes=_VMEM_LIMIT),
    )(valid_length, qkv, qkv, qkv)


# ----------------------------------------------------------------------------
# fused pooler (tanh) + classifier, lane-dense padded output
# ----------------------------------------------------------------------------
def _pool_cls_kernel(x_ref, wp_ref, bp_ref, wc_ref, bc_ref, o_ref):
    pooled = jnp.tanh(jnp.dot(x_ref[...], wp_ref[...],
                              preferred_element_type=jnp.float32)
                      + bp_ref[...].astype(jnp.float32))
    # TODO(synk): training-mode dropout (dr_rate) omitted — identity at inference.
    logits = (jnp.dot(pooled.astype(wc_ref.dtype), wc_ref[...],
                      preferred_element_type=jnp.float32)
              + bc_ref[...].astype(jnp.float32))
    o_ref[...] = logits


def pooler_classifier(cls_tok, w_pool, b_pool, wc_pad, bc_pad, num_classes):
    B, H = cls_tok.shape
    Cp = wc_pad.shape[1]
    out = pl.pallas_call(
        _pool_cls_kernel,
        out_shape=jax.ShapeDtypeStruct((B, Cp), jnp.float32),
        grid=(1,),
        in_specs=[pl.BlockSpec((B, H), lambda i: (0, 0)),
                  pl.BlockSpec((H, H), lambda i: (0, 0)),
                  pl.BlockSpec((1, H), lambda i: (0, 0)),
                  pl.BlockSpec((H, Cp), lambda i: (0, 0)),
                  pl.BlockSpec((1, Cp), lambda i: (0, 0))],
        out_specs=pl.BlockSpec((B, Cp), lambda i: (0, 0)),
        compiler_params=pltpu.CompilerParams(vmem_limit_bytes=_VMEM_LIMIT),
    )(cls_tok, w_pool, b_pool, wc_pad, bc_pad)
    return out[:, :num_classes]


# ----------------------------------------------------------------------------
# synthetic deterministic parameters (shapes implied by BERTClassifier.__init__)
# ----------------------------------------------------------------------------
def init_params(key, vocab, hidden, ffn, max_pos, num_classes, type_vocab=2):
    ks = jax.random.split(key, 12)

    def dense(k, fi, fo):
        return 0.02 * jax.random.normal(k, (fi, fo), jnp.float32)

    return {
        "tok_emb": 0.02 * jax.random.normal(ks[0], (vocab, hidden), jnp.float32),
        "seg_emb": 0.02 * jax.random.normal(ks[1], (type_vocab, hidden), jnp.float32),
        "pos_emb": 0.02 * jax.random.normal(ks[2], (max_pos, hidden), jnp.float32),
        "ln_emb_g": jnp.ones((hidden,), jnp.float32), "ln_emb_b": jnp.zeros((hidden,), jnp.float32),
        "wq": dense(ks[3], hidden, hidden), "bq": jnp.zeros((hidden,), jnp.float32),
        "wk": dense(ks[4], hidden, hidden), "bk": jnp.zeros((hidden,), jnp.float32),
        "wv": dense(ks[5], hidden, hidden), "bv": jnp.zeros((hidden,), jnp.float32),
        "wo": dense(ks[6], hidden, hidden), "bo": jnp.zeros((hidden,), jnp.float32),
        "ln1_g": jnp.ones((hidden,), jnp.float32), "ln1_b": jnp.zeros((hidden,), jnp.float32),
        "w_ff1": dense(ks[7], hidden, ffn), "b_ff1": jnp.zeros((ffn,), jnp.float32),
        "w_ff2": dense(ks[8], ffn, hidden), "b_ff2": jnp.zeros((hidden,), jnp.float32),
        "ln2_g": jnp.ones((hidden,), jnp.float32), "ln2_b": jnp.zeros((hidden,), jnp.float32),
        "w_pool": dense(ks[9], hidden, hidden), "b_pool": jnp.zeros((hidden,), jnp.float32),
        # self.classifier = nn.Linear(hidden_size, num_classes)
        "w_cls": dense(ks[10], hidden, num_classes), "b_cls": jnp.zeros((num_classes,), jnp.float32),
    }


def pack_params(p):
    """One-time weight packing (done at load time, NOT per forward call):
    QKV stacking, bf16 casts, bias/LN reshapes, classifier lane padding."""
    H = p["tok_emb"].shape[1]
    FFN = p["w_ff1"].shape[1]
    C = p["w_cls"].shape[1]
    Cp = max(128, _round_up(C, 128))
    wc = jnp.zeros((H, Cp), jnp.bfloat16).at[:, :C].set(p["w_cls"].astype(jnp.bfloat16))
    bc = jnp.zeros((1, Cp), jnp.float32).at[:, :C].set(p["b_cls"].reshape(1, C))

    def row(x, n):
        return x.reshape(1, n).astype(jnp.float32)

    return {
        "tok_emb": p["tok_emb"], "seg_emb": p["seg_emb"], "pos_emb": p["pos_emb"],
        "ln_emb_g": row(p["ln_emb_g"], H), "ln_emb_b": row(p["ln_emb_b"], H),
        "wqkv": jnp.stack([p["wq"], p["wk"], p["wv"]], axis=0).astype(jnp.bfloat16),  # (3,H,H)
        "bqkv": jnp.stack([p["bq"], p["bk"], p["bv"]], axis=0).astype(jnp.float32),   # (3,H)
        "wo": p["wo"].astype(jnp.bfloat16), "bo": row(p["bo"], H),
        "ln1_g": row(p["ln1_g"], H), "ln1_b": row(p["ln1_b"], H),
        "w_ff1": p["w_ff1"].astype(jnp.bfloat16), "b_ff1": row(p["b_ff1"], FFN),
        "w_ff2": p["w_ff2"].astype(jnp.bfloat16), "b_ff2": row(p["b_ff2"], H),
        "ln2_g": row(p["ln2_g"], H), "ln2_b": row(p["ln2_b"], H),
        "w_pool": p["w_pool"].astype(jnp.bfloat16), "b_pool": row(p["b_pool"], H),
        "w_cls_pad": wc, "b_cls_pad": bc, "num_classes": C,
    }


# ----------------------------------------------------------------------------
# BERTClassifier.forward
# ----------------------------------------------------------------------------
def bert_classifier_forward(pp, token_ids, valid_length, segment_ids, num_heads):
    B, S = token_ids.shape
    H = pp["tok_emb"].shape[1]

    # --- synthetic bert(input_ids, token_type_ids, attention_mask) -----------
    # embedding gathers = plain-JAX glue
    emb = (jnp.take(pp["tok_emb"], token_ids, axis=0)
           + jnp.take(pp["seg_emb"], segment_ids.astype(jnp.int32), axis=0)
           + pp["pos_emb"][None, :S, :])
    h = layer_norm(emb.reshape(B * S, H), pp["ln_emb_g"], pp["ln_emb_b"])    # (B*S,H) bf16

    # fused Q/K/V projection -> (3, B*S, H) slabs (no head-split transposes)
    qkv = qkv_projection(h, pp["wqkv"], pp["bqkv"]).reshape(3, B, S, H)

    # attention mask built in-kernel from scalar-prefetched valid_length
    # (replaces the original gen_attention_mask + HBM round-trip).
    ctx = masked_attention(qkv, valid_length.astype(jnp.int32), num_heads)   # (B,S,H) bf16
    ctx = ctx.reshape(B * S, H)

    # out-proj + residual + LN fused;  FFN: gelu GEMM (N-tiled) then GEMM+residual+LN
    h = fused_linear(ctx, pp["wo"], pp["bo"], residual=h,
                     ln=(pp["ln1_g"], pp["ln1_b"]))
    ff = fused_linear_ntiled(h, pp["w_ff1"], pp["b_ff1"], act="gelu")
    h = fused_linear(ff, pp["w_ff2"], pp["b_ff2"], residual=h,
                     ln=(pp["ln2_g"], pp["ln2_b"]))

    # pooler = tanh(W * h_[CLS] + b); dropout is identity at inference.
    cls_tok = h.reshape(B, S, H)[:, 0, :]

    # return self.classifier(dropout(pooler))   (pooler + classifier fused)
    return pooler_classifier(cls_tok, pp["w_pool"], pp["b_pool"],
                             pp["w_cls_pad"], pp["b_cls_pad"], pp["num_classes"])


# ----------------------------------------------------------------------------
if __name__ == "__main__":
    B, S, HID, HEADS, FFN, CLASSES, VOCAB = 2, 8, 32, 2, 64, 2, 50

    key = jax.random.PRNGKey(0)
    kp, kt, ks = jax.random.split(key, 3)

    raw = init_params(kp, vocab=VOCAB, hidden=HID, ffn=FFN,
                      max_pos=S, num_classes=CLASSES)
    params = pack_params(raw)          # one-time packing (hoisted out of forward)

    token_ids = jax.random.randint(kt, (B, S), 0, VOCAB, dtype=jnp.int32)
    segment_ids = jax.random.randint(ks, (B, S), 0, 2, dtype=jnp.int32)
    valid_length = jnp.array([5, 8], dtype=jnp.int32)

    logits = bert_classifier_forward(params, token_ids, valid_length,
                                     segment_ids, num_heads=HEADS)
    jax.block_until_ready(logits)
    assert logits.shape == (B, CLASSES) and logits.dtype == jnp.float32
    print("KERNEL_OK")
</pallas_src>

<mosaic_0001>
module attributes {stable_mosaic.version = 11 : i64} {
  func.func @_ln_kernel(%arg0: i32, %arg1: memref<16x32xf32, #tpu.memory_space<vmem>>, %arg2: memref<1x32xf32, #tpu.memory_space<vmem>>, %arg3: memref<1x32xf32, #tpu.memory_space<vmem>>, %arg4: memref<16x32xbf16, #tpu.memory_space<vmem>>) attributes {dimension_semantics = [#tpu.dimension_semantics<parallel>], iteration_bounds = array<i64: 1>, scalar_prefetch = 0 : i64, scratch_operands = 0 : i64, tpu.core_type = #tpu.core_type<tc>, window_params = [{transform_indices = @transform_0, window_bounds = array<i64: 16, 32>}, {pipeline_mode = #tpu.pipeline_mode<synchronous>, transform_indices = @transform_1, window_bounds = array<i64: 1, 32>}, {pipeline_mode = #tpu.pipeline_mode<synchronous>, transform_indices = @transform_2, window_bounds = array<i64: 1, 32>}, {transform_indices = @transform_3, window_bounds = array<i64: 16, 32>}]} {
    %c0 = arith.constant 0 : index
    %c0_0 = arith.constant 0 : index
    %0 = vector.load %arg1[%c0, %c0_0] : memref<16x32xf32, #tpu.memory_space<vmem>>, vector<16x32xf32>
    %cst = arith.constant dense<0.000000e+00> : vector<16xf32>
    %1 = vector.multi_reduction <add>, %0, %cst [1] : vector<16x32xf32> to vector<16xf32>
    %2 = vector.shape_cast %1 : vector<16xf32> to vector<16x1xf32>
    %cst_1 = arith.constant 3.200000e+01 : f32
    %3 = vector.broadcast %cst_1 : f32 to vector<16x1xf32>
    %4 = arith.divf %2, %3 : vector<16x1xf32>
    %5 = vector.broadcast %4 : vector<16x1xf32> to vector<16x32xf32>
    %6 = arith.subf %0, %5 : vector<16x32xf32>
    %7 = arith.mulf %6, %6 : vector<16x32xf32>
    %cst_2 = arith.constant dense<0.000000e+00> : vector<16xf32>
    %8 = vector.multi_reduction <add>, %7, %cst_2 [1] : vector<16x32xf32> to vector<16xf32>
    %9 = vector.shape_cast %8 : vector<16xf32> to vector<16x1xf32>
    %cst_3 = arith.constant 3.200000e+01 : f32
    %10 = vector.broadcast %cst_3 : f32 to vector<16x1xf32>
    %11 = arith.divf %9, %10 : vector<16x1xf32>
    %12 = vector.broadcast %4 : vector<16x1xf32> to vector<16x32xf32>
    %13 = arith.subf %0, %12 : vector<16x32xf32>
    %cst_4 = arith.constant 9.99999996E-13 : f32
    %14 = vector.broadcast %cst_4 : f32 to vector<16x1xf32>
    %15 = arith.addf %11, %14 : vector<16x1xf32>
    %16 = math.rsqrt %15 : vector<16x1xf32>
    %17 = vector.broadcast %16 : vector<16x1xf32> to vector<16x32xf32>
    %18 = arith.mulf %13, %17 : vector<16x32xf32>
    %c0_5 = arith.constant 0 : index
    %c0_6 = arith.constant 0 : index
    %19 = vector.load %arg2[%c0_5, %c0_6] : memref<1x32xf32, #tpu.memory_space<vmem>>, vector<1x32xf32>
    %20 = vector.broadcast %19 : vector<1x32xf32> to vector<16x32xf32>
    %21 = arith.mulf %18, %20 : vector<16x32xf32>
    %c0_7 = arith.constant 0 : index
    %c0_8 = arith.constant 0 : index
    %22 = vector.load %arg3[%c0_7, %c0_8] : memref<1x32xf32, #tpu.memory_space<vmem>>, vector<1x32xf32>
    %23 = vector.broadcast %22 : vector<1x32xf32> to vector<16x32xf32>
    %24 = arith.addf %21, %23 : vector<16x32xf32>
    %25 = arith.truncf %24 : vector<16x32xf32> to vector<16x32xbf16>
    %c0_9 = arith.constant 0 : index
    %c0_10 = arith.constant 0 : index
    %26 = vector.load %arg4[%c0_9, %c0_10] : memref<16x32xbf16, #tpu.memory_space<vmem>>, vector<16x32xbf16>
    tpu.vector_store %arg4[%c0_9, %c0_10], %25 {strides = array<i32>} : memref<16x32xbf16, #tpu.memory_space<vmem>>, vector<16x32xbf16>,
    return
  }
  func.func @transform_0(%arg0: i32) -> (i32, i32) {
    %c0_i32 = arith.constant 0 : i32
    %c0_i32_0 = arith.constant 0 : i32
    return %arg0, %c0_i32 : i32, i32
  }
  func.func @transform_1(%arg0: i32) -> (i32, i32) {
    %c0_i32 = arith.constant 0 : i32
    %c0_i32_0 = arith.constant 0 : i32
    %c0_i32_1 = arith.constant 0 : i32
    return %c0_i32, %c0_i32_0 : i32, i32
  }
  func.func @transform_2(%arg0: i32) -> (i32, i32) {
    %c0_i32 = arith.constant 0 : i32
    %c0_i32_0 = arith.constant 0 : i32
    %c0_i32_1 = arith.constant 0 : i32
    return %c0_i32, %c0_i32_0 : i32, i32
  }
  func.func @transform_3(%arg0: i32) -> (i32, i32) {
    %c0_i32 = arith.constant 0 : i32
    %c0_i32_0 = arith.constant 0 : i32
    return %arg0, %c0_i32 : i32, i32
  }
}

</mosaic_0001>

<llo_original>
// kernel: tpu_custom_call.1
$region0: #{tpu_custom_call.1}
  #allocation0 [shape = 'u32[]', space=smem, size = 0x4, offset = 0x4, fixed_abs, tag = 'smem constant byte address 0x4 - core index']
  #allocation1 [shape = 'u32[72,128]{1,0:T(1,128)}', space=vmem, size = 0x9000, scoped, tag = 'internal scratch']
  %s0 = inlined_call_operand.hbm [shape: f32[16,32], index: 0, kind: input, shape index: {}]
  %s1 = inlined_call_operand.hbm [shape: f32[1,32], index: 1, kind: input, shape index: {}]
  %s2 = inlined_call_operand.vmem [shape: f32[1,32], index: 2, kind: input, shape index: {}]
  %s3 = inlined_call_operand.hbm [shape: bf16[16,32], index: 3, kind: output, shape index: {}]
  %s4 = sld [smem:[#allocation0]]
  $region30: #{tpu_custom_call.1} parent=0
    _
  %s6 = ssub.s32 1, %s4
  %s7 = scalar_select 0, %s6, %s4
  $region1: #{tpu_custom_call.1} parent=0
    #allocation2 [shape = 'u8[8192]{0}', space=vmem, size = 0x2000, scoped, tag = 'input window, operand 0, single buffered']
    #allocation3 [shape = 's32[1]{0}', space=sflag, size = 0x4, scoped, tag = 'scoped memory for tpu_custom_call.1']
    #allocation4 [shape = 's32[1]{0}', space=sflag, size = 0x4, scoped, tag = 'scoped memory for tpu_custom_call.1']
    #allocation5 [shape = 'u8[512]{0}', space=vmem, size = 0x400, scoped, tag = 'input window, operand 1, single buffered']
    #allocation6 [shape = 's32[1]{0}', space=sflag, size = 0x4, scoped, tag = 'scoped memory for tpu_custom_call.1']
    #allocation7 [shape = 'u8[4096]{0}', space=vmem, size = 0x1000, scoped, tag = 'output window, operand 0, single buffered']
    %8 = vsyncpa [#allocation3], 0
    %9 = vsyncpa [#allocation6], 0
    %10 = vsyncpa [#allocation4], 0
    // Predicated region
    $region2: #{tpu_custom_call.1} parent=1 // pred_check
      _
    $region3: #{tpu_custom_call.1} parent=1 // pred_check_branch
      %12 = sbr.rel (0) target = $region5
    $region4: #{tpu_custom_call.1} parent=1 // pred_region
      %14 = vsyncadd [#allocation3], 0
      %s15 = sshll.u32 %s0, 4
      %s16 = int_to_ptr.hbm [resolvable:$true] %s15
      %s17 = sshll.u32 [#allocation2], 4
      %s18 = int_to_ptr.vmem [resolvable:$true] %s17
      %23 = dma.hbm_to_vmem [thread:$0]  %s16, 256, %s18, [#allocation3], 128, 128, 8
    $region5: #{tpu_custom_call.1} parent=1 // pred_fallthru
      _
    // Predicated region
    $region6: #{tpu_custom_call.1} parent=1 // pred_check
      _
    $region7: #{tpu_custom_call.1} parent=1 // pred_check_branch
      %25 = sbr.rel (0) target = $region9
    $region8: #{tpu_custom_call.1} parent=1 // pred_region
      %27 = vsyncadd [#allocation6], 0
      %s29 = sshll.u32 %s1, 4
      %s30 = int_to_ptr.hbm [resolvable:$true] %s29
      %s31 = sshll.u32 [#allocation5], 4
      %s32 = int_to_ptr.vmem [resolvable:$true] %s31
      %34 = dma.hbm_to_vmem [thread:$0]  %s30, 16, %s32, [#allocation6]
    $region9: #{tpu_custom_call.1} parent=1 // pred_fallthru
      _
    // Predicated region
    $region10: #{tpu_custom_call.1} parent=1 // pred_check
      _
    $region11: #{tpu_custom_call.1} parent=1 // pred_check_branch
      %36 = sbr.rel (0) target = $region13
    $region12: #{tpu_custom_call.1} parent=1 // pred_region
      _
    $region13: #{tpu_custom_call.1} parent=1 // pred_fallthru
      _
    // Predicated region
    $region14: #{tpu_custom_call.1} parent=1 // pred_check
      _
    $region15: #{tpu_custom_call.1} parent=1 // pred_check_branch
      %38 = sbr.rel (0) target = $region17
    $region16: #{tpu_custom_call.1} parent=1 // pred_region
      %40 = dma.done [#allocation3], 256
    $region17: #{tpu_custom_call.1} parent=1 // pred_fallthru
      _
    // Predicated region
    $region18: #{tpu_custom_call.1} parent=1 // pred_check
      _
    $region19: #{tpu_custom_call.1} parent=1 // pred_check_branch
      %42 = sbr.rel (0) target = $region21
    $region20: #{tpu_custom_call.1} parent=1 // pred_region
      %44 = dma.done [#allocation6], 16
    $region21: #{tpu_custom_call.1} parent=1 // pred_fallthru
      _
    %v45 = vld [vmem:[#allocation2] sm:$0xff]
    %v46 = vld [vmem:[#allocation2 + $0x8] sm:$0xff]
    %vm47 = vcmask 261120
    %v48 = vsel %vm47, %v45, 0.0
    %49 = vadd.xlane.f32.xlu0 %v48
    %v50 = vpop.xlane.xlu0 %49
    %v51 = vsel %vm47, %v46, 0.0
    %52 = vadd.xlane.f32.xlu0 %v51
    %v53 = vpop.xlane.xlu0 %52
    %v54 = vrcp.pop 32.0
    %v55 = vmul.f32 32.0, %v54
    %v56 = vsub.f32 1.0, %v55
    %v57 = vmul.f32 %v54, %v56
    %v58 = vadd.f32 %v54, %v57
    %vm59 = vweird.f32 %v54
    %v60 = vsel %vm59, %v54, %v58
    %v61 = vmul.f32 %v50, %v60
    %v62 = vmul.f32 %v53, %v60
    %v63 = vsub.f32 %v45, %v61
    %v64 = vsub.f32 %v46, %v62
    %v65 = vmul.f32 %v63, %v63
    %v66 = vmul.f32 %v64, %v64
    %v67 = vsel %vm47, %v65, 0.0
    %68 = vadd.xlane.f32.xlu0 %v67
    %v69 = vpop.xlane.xlu0 %68
    %v70 = vsel %vm47, %v66, 0.0
    %71 = vadd.xlane.f32.xlu0 %v70
    %v72 = vpop.xlane.xlu0 %71
    %v73 = vmul.f32 %v69, %v60
    %v74 = vmul.f32 %v72, %v60
    %v75 = vadd.f32 %v73, 1e-12
    %v76 = vadd.f32 %v74, 1e-12
    %v77 = vrsqrt.pop %v75
    %v78 = vmul.f32 %v77, %v75
    %v79 = vmul.f32 %v78, %v77
    %v80 = vmul.f32 0.5, %v79
    %v81 = vsub.f32 1.5, %v80
    %v82 = vmul.f32 %v77, %v81
    %vm83 = vweird.f32 %v75
    %vm84 = vweird.f32 %v77
    %vm85 = vmor %vm83, %vm84
    %v86 = vsel %vm85, %v77, %v82
    %v87 = vrsqrt.pop %v76
    %v88 = vmul.f32 %v87, %v76
    %v89 = vmul.f32 %v88, %v87
    %v90 = vmul.f32 0.5, %v89
    %v91 = vsub.f32 1.5, %v90
    %v92 = vmul.f32 %v87, %v91
    %vm93 = vweird.f32 %v76
    %vm94 = vweird.f32 %v87
    %vm95 = vmor %vm93, %vm94
    %v96 = vsel %vm95, %v87, %v92
    %v97 = vmul.f32 %v63, %v86
    %v98 = vmul.f32 %v64, %v96
    %v99 = vld [vmem:[#allocation5] sm:$0x1]
    %v101 = vperm.slane %v99, 0
    %v103 = vmul.f32 %v97, %v101
    %v104 = vmul.f32 %v98, %v101
    %v105 = vld [vmem:[%s2] sm:$0x1]
    %v107 = vperm.slane %v105, 0
    %v109 = vadd.f32 %v103, %v107
    %v110 = vadd.f32 %v104, %v107
    %v111 = vpack.c.bf16 %v109, %v109
    %v112 = vpack.c.bf16 %v110, %v110
    %vm113 = vcmask 257024
    %114 = vst.msk [vmem:[#allocation7] sm:$0xf] %vm113, %v111
    %115 = vst.msk [vmem:[#allocation7 + $0x4] sm:$0xf] %vm113, %v112
    // Predicated region
    $region22: #{tpu_custom_call.1} parent=1 // pred_check
      _
    $region23: #{tpu_custom_call.1} parent=1 // pred_check_branch
      %117 = sbr.rel (0) target = $region25
    $region24: #{tpu_custom_call.1} parent=1 // pred_region
      %119 = vsyncadd [#allocation4], 0
      %s120 = sshll.u32 [#allocation7], 4
      %s121 = int_to_ptr.vmem [resolvable:$true] %s120
      %s122 = sshll.u32 %s3, 4
      %s123 = int_to_ptr.hbm [resolvable:$true] %s122
      %128 = dma.vmem_to_hbm [thread:$0]  %s121, 128, %s123, [#allocation4], 64, 64, 4
    $region25: #{tpu_custom_call.1} parent=1 // pred_fallthru
      _
    // Predicated region
    $region26: #{tpu_custom_call.1} parent=1 // pred_check
      _
    $region27: #{tpu_custom_call.1} parent=1 // pred_check_branch
      %130 = sbr.rel (0) target = $region29
    $region28: #{tpu_custom_call.1} parent=1 // pred_region
      %132 = dma.done [#allocation4], 128
    $region29: #{tpu_custom_call.1} parent=1 // pred_fallthru
      _
    %133 = vsyncpa [#allocation3], 1
    %134 = vsyncpa [#allocation6], 1
    %135 = vsyncpa [#allocation4], 1

</llo_original>
